<compile_context>
chip_gen: v6e
topology: v6e:2x2x1
jax: 0.10.0
libtpu: 0.0.40
codegen_flags: <defaults>
</compile_context>

<pallas_src>
import functools

import jax
import jax.numpy as jnp
from jax.experimental import pallas as pl
from jax.experimental.pallas import tpu as pltpu

_LANE = 128  # lane width / MXU alignment


def _round_up(v, m):
    return (v + m - 1) // m * m


def _subblock_kernel(x_ref, w1_ref, b1_ref, w2_ref, b2_ref, o_ref):
    """One (TB, D) batch tile of g(x) = Linear2(act(Linear1(x))).

    x_ref : (TB, D) f32      w*_ref: (D, D) bf16 (stored (in, out))
    b*_ref: (1, D)  f32      o_ref : (TB, D) f32
    """
    x = x_ref[...].astype(jnp.bfloat16)

    # Linear 1 (bf16 MXU matmul, f32 accumulation) + activation.
    h = jnp.dot(x, w1_ref[...], preferred_element_type=jnp.float32)
    h = h + b1_ref[...]
    h = jnp.maximum(h, 0.0)  # TODO(synk): ReLU stand-in for get_activation_model(...)

    # Linear 2 (no trailing activation / no residual add in this sub-block).
    y = jnp.dot(h.astype(jnp.bfloat16), w2_ref[...],
                preferred_element_type=jnp.float32)
    y = y + b2_ref[...]

    o_ref[...] = y.astype(o_ref.dtype)


@functools.partial(jax.jit, static_argnames=("batch_tile",))
def resnet_nonlinear_subblock(x, w1, b1, w2, b2, *, batch_tile=128):
    """Fused Pallas forward of ResNetNonLinearSubBlock.

    x : (B, D) f32
    w1, w2 : (D, D) f32 (pre-transposed to (in, out))
    b1, b2 : (D,)   f32
    Returns (B, D) f32.
    """
    B, D = x.shape
    tb = batch_tile
    Dp = _round_up(D, _LANE)   # lane-dense feature dim
    Bp = _round_up(B, tb)      # whole number of batch tiles

    # Zero-pad to aligned shapes (inert for the linear algebra; sliced off below).
    xp = jnp.pad(x, ((0, Bp - B), (0, Dp - D)))

    def pad_w(w):
        return jnp.pad(w, ((0, Dp - D), (0, Dp - D))).astype(jnp.bfloat16)

    def pad_b(b):
        return jnp.pad(b.reshape(1, D), ((0, 0), (0, Dp - D))).astype(jnp.float32)

    w1p, w2p = pad_w(w1), pad_w(w2)
    b1p, b2p = pad_b(b1), pad_b(b2)

    grid = (Bp // tb,)

    flops = 2 * (2 * Bp * Dp * Dp)                      # two (Bp,Dp)x(Dp,Dp) matmuls
    bytes_accessed = ((Bp * Dp) * 4 * 2                 # x in + y out (f32)
                      + 2 * (Dp * Dp) * 2               # two bf16 weight matrices
                      + 2 * Dp * 4)                     # two f32 bias rows

    out = pl.pallas_call(
        _subblock_kernel,
        out_shape=jax.ShapeDtypeStruct((Bp, Dp), x.dtype),
        grid_spec=pltpu.PrefetchScalarGridSpec(
            num_scalar_prefetch=0,
            grid=grid,
            in_specs=[
                pl.BlockSpec((tb, Dp), lambda i: (i, 0)),   # x tile (pipelined over batch)
                pl.BlockSpec((Dp, Dp), lambda i: (0, 0)),   # w1 (grid-invariant, bf16)
                pl.BlockSpec((1, Dp), lambda i: (0, 0)),    # b1
                pl.BlockSpec((Dp, Dp), lambda i: (0, 0)),   # w2 (grid-invariant, bf16)
                pl.BlockSpec((1, Dp), lambda i: (0, 0)),    # b2
            ],
            out_specs=pl.BlockSpec((tb, Dp), lambda i: (i, 0)),
        ),
        compiler_params=pltpu.CompilerParams(
            dimension_semantics=("parallel",),      # batch axis sharded across TCs
            vmem_limit_bytes=32 * 1024 * 1024,      # explicit, safe on v5e/v6e/v7x
        ),
        cost_estimate=pl.CostEstimate(
            flops=flops, transcendentals=0, bytes_accessed=bytes_accessed),
    )(xp, w1p, b1p, w2p, b2p)

    return out[:B, :D]


def reference_forward(x, w1, b1, w2, b2):
    """Pure-JAX reference with the same bf16/f32 mixed precision as the kernel."""
    xb = x.astype(jnp.bfloat16)
    h = jnp.dot(xb, w1.astype(jnp.bfloat16),
                preferred_element_type=jnp.float32) + b1.reshape(1, -1)
    h = jnp.maximum(h, 0.0)
    y = jnp.dot(h.astype(jnp.bfloat16), w2.astype(jnp.bfloat16),
                preferred_element_type=jnp.float32) + b2.reshape(1, -1)
    return y


if __name__ == "__main__":
    key = jax.random.PRNGKey(0)
    kx, k1, kb1, k2, kb2 = jax.random.split(key, 5)

    # Small but lane-dense / MXU-aligned shapes: dim=128, batch=256 (2 grid tiles).
    batch, dim = 256, 128
    scale = 0.1

    x = jax.random.normal(kx, (batch, dim), jnp.float32)
    # Weights stored (in, out) == PyTorch Linear weight (out, in) transposed.
    w1 = scale * jax.random.normal(k1, (dim, dim), jnp.float32)
    b1 = scale * jax.random.normal(kb1, (dim,), jnp.float32)
    w2 = scale * jax.random.normal(k2, (dim, dim), jnp.float32)
    b2 = scale * jax.random.normal(kb2, (dim,), jnp.float32)

    out = resnet_nonlinear_subblock(x, w1, b1, w2, b2, batch_tile=128)
    out = jax.block_until_ready(out)

    ref = reference_forward(x, w1, b1, w2, b2)
    assert out.shape == (batch, dim)
    assert jnp.allclose(out, ref, atol=1e-3, rtol=1e-3), float(
        jnp.max(jnp.abs(out - ref)))

    print("KERNEL_OK")
</pallas_src>

<mosaic_0001>
module attributes {stable_mosaic.version = 11 : i64} {
  func.func @_subblock_kernel(%arg0: i32, %arg1: memref<128x128xf32, #tpu.memory_space<vmem>>, %arg2: memref<128x128xbf16, #tpu.memory_space<vmem>>, %arg3: memref<1x128xf32, #tpu.memory_space<vmem>>, %arg4: memref<128x128xbf16, #tpu.memory_space<vmem>>, %arg5: memref<1x128xf32, #tpu.memory_space<vmem>>, %arg6: memref<128x128xf32, #tpu.memory_space<vmem>>) attributes {dimension_semantics = [#tpu.dimension_semantics<parallel>], iteration_bounds = array<i64: 2>, scalar_prefetch = 0 : i64, scratch_operands = 0 : i64, tpu.core_type = #tpu.core_type<tc>, window_params = [{transform_indices = @transform_0, window_bounds = array<i64: 128, 128>}, {pipeline_mode = #tpu.pipeline_mode<synchronous>, transform_indices = @transform_1, window_bounds = array<i64: 128, 128>}, {pipeline_mode = #tpu.pipeline_mode<synchronous>, transform_indices = @transform_2, window_bounds = array<i64: 1, 128>}, {pipeline_mode = #tpu.pipeline_mode<synchronous>, transform_indices = @transform_3, window_bounds = array<i64: 128, 128>}, {pipeline_mode = #tpu.pipeline_mode<synchronous>, transform_indices = @transform_4, window_bounds = array<i64: 1, 128>}, {transform_indices = @transform_5, window_bounds = array<i64: 128, 128>}]} {
    %c0 = arith.constant 0 : index
    %c0_0 = arith.constant 0 : index
    %0 = vector.load %arg1[%c0, %c0_0] : memref<128x128xf32, #tpu.memory_space<vmem>>, vector<128x128xf32>
    %1 = arith.truncf %0 : vector<128x128xf32> to vector<128x128xbf16>
    %c0_1 = arith.constant 0 : index
    %c0_2 = arith.constant 0 : index
    %2 = vector.load %arg2[%c0_1, %c0_2] : memref<128x128xbf16, #tpu.memory_space<vmem>>, vector<128x128xbf16>
    %cst = arith.constant dense<0.000000e+00> : vector<128x128xf32>
    %3 = tpu.matmul %1, %2, %cst {dimension_numbers = #tpu.dot_dimension_numbers<[1], [0], [0], [1], [0, 0, 1, 1], [], []>} : vector<128x128xbf16>, vector<128x128xbf16>, vector<128x128xf32> -> vector<128x128xf32>
    %c0_3 = arith.constant 0 : index
    %c0_4 = arith.constant 0 : index
    %4 = vector.load %arg3[%c0_3, %c0_4] : memref<1x128xf32, #tpu.memory_space<vmem>>, vector<1x128xf32>
    %5 = vector.broadcast %4 : vector<1x128xf32> to vector<128x128xf32>
    %6 = arith.addf %3, %5 : vector<128x128xf32>
    %cst_5 = arith.constant 0.000000e+00 : f32
    %7 = vector.broadcast %cst_5 : f32 to vector<128x128xf32>
    %8 = arith.maximumf %6, %7 : vector<128x128xf32>
    %9 = arith.truncf %8 : vector<128x128xf32> to vector<128x128xbf16>
    %c0_6 = arith.constant 0 : index
    %c0_7 = arith.constant 0 : index
    %10 = vector.load %arg4[%c0_6, %c0_7] : memref<128x128xbf16, #tpu.memory_space<vmem>>, vector<128x128xbf16>
    %cst_8 = arith.constant dense<0.000000e+00> : vector<128x128xf32>
    %11 = tpu.matmul %9, %10, %cst_8 {dimension_numbers = #tpu.dot_dimension_numbers<[1], [0], [0], [1], [0, 0, 1, 1], [], []>} : vector<128x128xbf16>, vector<128x128xbf16>, vector<128x128xf32> -> vector<128x128xf32>
    %c0_9 = arith.constant 0 : index
    %c0_10 = arith.constant 0 : index
    %12 = vector.load %arg5[%c0_9, %c0_10] : memref<1x128xf32, #tpu.memory_space<vmem>>, vector<1x128xf32>
    %13 = vector.broadcast %12 : vector<1x128xf32> to vector<128x128xf32>
    %14 = arith.addf %11, %13 : vector<128x128xf32>
    %c0_11 = arith.constant 0 : index
    %c0_12 = arith.constant 0 : index
    %15 = vector.load %arg6[%c0_11, %c0_12] : memref<128x128xf32, #tpu.memory_space<vmem>>, vector<128x128xf32>
    tpu.vector_store %arg6[%c0_11, %c0_12], %14 {strides = array<i32>} : memref<128x128xf32, #tpu.memory_space<vmem>>, vector<128x128xf32>,
    return
  }
  func.func @transform_0(%arg0: i32) -> (i32, i32) {
    %c0_i32 = arith.constant 0 : i32
    %c0_i32_0 = arith.constant 0 : i32
    return %arg0, %c0_i32 : i32, i32
  }
  func.func @transform_1(%arg0: i32) -> (i32, i32) {
    %c0_i32 = arith.constant 0 : i32
    %c0_i32_0 = arith.constant 0 : i32
    %c0_i32_1 = arith.constant 0 : i32
    return %c0_i32, %c0_i32_0 : i32, i32
  }
  func.func @transform_2(%arg0: i32) -> (i32, i32) {
    %c0_i32 = arith.constant 0 : i32
    %c0_i32_0 = arith.constant 0 : i32
    %c0_i32_1 = arith.constant 0 : i32
    return %c0_i32, %c0_i32_0 : i32, i32
  }
  func.func @transform_3(%arg0: i32) -> (i32, i32) {
    %c0_i32 = arith.constant 0 : i32
    %c0_i32_0 = arith.constant 0 : i32
    %c0_i32_1 = arith.constant 0 : i32
    return %c0_i32, %c0_i32_0 : i32, i32
  }
  func.func @transform_4(%arg0: i32) -> (i32, i32) {
    %c0_i32 = arith.constant 0 : i32
    %c0_i32_0 = arith.constant 0 : i32
    %c0_i32_1 = arith.constant 0 : i32
    return %c0_i32, %c0_i32_0 : i32, i32
  }
  func.func @transform_5(%arg0: i32) -> (i32, i32) {
    %c0_i32 = arith.constant 0 : i32
    %c0_i32_0 = arith.constant 0 : i32
    return %arg0, %c0_i32 : i32, i32
  }
}

</mosaic_0001>

<llo_original>
// kernel: resnet_nonlinear_subblock.1
$region0: #{resnet_nonlinear_subblock.1}
  #allocation0 [shape = 'u32[]', space=smem, size = 0x4, offset = 0x4, fixed_abs, tag = 'smem constant byte address 0x4 - core index']
  #allocation1 [shape = 'u32[144,128]{1,0:T(1,128)}', space=vmem, size = 0x12000, scoped, tag = 'internal scratch']
  %s0 = inlined_call_operand.vmem [shape: f32[256,128], index: 0, kind: input, shape index: {}]
  %s1 = inlined_call_operand.vmem [shape: bf16[128,128], index: 1, kind: input, shape index: {}]
  %s2 = inlined_call_operand.vmem [shape: f32[1,128], index: 2, kind: input, shape index: {}]
  %s3 = inlined_call_operand.vmem [shape: bf16[128,128], index: 3, kind: input, shape index: {}]
  %s4 = inlined_call_operand.vmem [shape: f32[1,128], index: 4, kind: input, shape index: {}]
  %s5 = inlined_call_operand.hbm [shape: f32[256,128], index: 5, kind: output, shape index: {}]
  %s6 = sld [smem:[#allocation0]]
  $region53: #{resnet_nonlinear_subblock.1} parent=0
    _
  %s8 = ssub.s32 1, %s6
  %s9 = scalar_select 0, %s8, %s6
  $region1: #{resnet_nonlinear_subblock.1} parent=0
    #allocation2 [shape = 'u8[131072]{0}', space=vmem, size = 0x20000, scoped, tag = 'output window, operand 0']
    #allocation3 [shape = 's32[2]{0}', space=sflag, size = 0x8, scoped, tag = 'scoped memory for resnet_nonlinear_subblock.1']
    %10 = vsyncpa [#allocation3], 0
    %s11 = scalar_lea.sflag [#allocation3], 1
    %12 = vsyncpa %s11, 0
    loop: start=0, step=1, limit=4
    $region2: #{resnet_nonlinear_subblock.1} parent=1 // loop_pre_header
      _
    $region3: #{resnet_nonlinear_subblock.1} parent=1 // loop_header
      %s14 = sphi 0, %s18
      %p15 = scmp.ge.s32.totalorder %s14, 4
      %s24 = sphi 0, %s26
      %s27 = sphi 0, %s24
      %s28 = sphi 0, %s27
      %s44 = sphi 0, %s28
      %s48 = sphi 0, %s48
      %s50 = sphi 0, %s48
      %s51 = sphi 0, %s50
      %s65 = sphi 0, %s51
      %s69 = sphi 0, %s69
      %s71 = sphi 0, %s69
      %s72 = sphi 0, %s71
      %s86 = sphi 0, %s72
      %s90 = sphi 0, %s90
      %s92 = sphi 0, %s90
      %s93 = sphi 0, %s92
      %s107 = sphi 0, %s93
      %s111 = sphi 0, %s111
      %s113 = sphi 0, %s111
      %s114 = sphi 0, %s113
      %s128 = sphi 0, %s114
      %s134 = sphi 0, %s136
      %s137 = sphi 0, %s134
      %s138 = sphi 0, %s137
      %s154 = sphi 0, %s138
    $region4: #{resnet_nonlinear_subblock.1} parent=1 // loop_header_branch
      %17 = sbr.rel (%p15) target = $region8
    $region5: #{resnet_nonlinear_subblock.1} parent=1 // loop_body
      %s19 = ssub.s32 %s14, 1
      %s20 = ssub.s32 %s14, 2
      %s21 = sadd.s32 %s14, 1
      %s22 = ssub.s32 %s14, %s21
      %p23 = scmp.eq.s32.totalorder %s22, 0
      %s25 = sadd.s32 %s24, 1
      %s26 = scalar_select %p23, %s24, %s25
      %p29 = pneg %p23
      %p30 = scmp.eq.s32.totalorder %s14, 1
      %p31 = por %p29, %p30
      %p32 = scmp.ne.s32.totalorder %s24, %s27
      %p33 = scmp.eq.s32.totalorder %s14, 0
      %p34 = por %p32, %p33
      %p35 = scmp.ne.s32.totalorder %s24, %s27
      %p36 = scmp.eq.s32.totalorder %s19, 1
      %p37 = por %p35, %p36
      %p38 = scmp.ne.s32.totalorder %s27, %s28
      %p39 = scmp.eq.s32.totalorder %s19, 0
      %p40 = por %p38, %p39
      %p41 = scmp.ne.s32.totalorder %s27, %s28
      %p42 = scmp.eq.s32.totalorder %s20, 1
      %p43 = por %p41, %p42
      %p45 = scmp.ne.s32.totalorder %s28, %s44
      %p46 = scmp.eq.s32.totalorder %s20, 0
      %p47 = por %p45, %p46
      %s49 = sadd.s32 %s48, 1
      %p52 = scmp.eq.s32.totalorder %s14, 1
      %p53 = scmp.ne.s32.totalorder %s48, %s50
      %p54 = scmp.eq.s32.totalorder %s14, 0
      %p55 = por %p53, %p54
      %p56 = scmp.ne.s32.totalorder %s48, %s50
      %p57 = scmp.eq.s32.totalorder %s19, 1
      %p58 = por %p56, %p57
      %p59 = scmp.ne.s32.totalorder %s50, %s51
      %p60 = scmp.eq.s32.totalorder %s19, 0
      %p61 = por %p59, %p60
      %p62 = scmp.ne.s32.totalorder %s50, %s51
      %p63 = scmp.eq.s32.totalorder %s20, 1
      %p64 = por %p62, %p63
      %p66 = scmp.ne.s32.totalorder %s51, %s65
      %p67 = scmp.eq.s32.totalorder %s20, 0
      %p68 = por %p66, %p67
      %s70 = sadd.s32 %s69, 1
      %p73 = scmp.eq.s32.totalorder %s14, 1
      %p74 = scmp.ne.s32.totalorder %s69, %s71
      %p75 = scmp.eq.s32.totalorder %s14, 0
      %p76 = por %p74, %p75
      %p77 = scmp.ne.s32.totalorder %s69, %s71
      %p78 = scmp.eq.s32.totalorder %s19, 1
      %p79 = por %p77, %p78
      %p80 = scmp.ne.s32.totalorder %s71, %s72
      %p81 = scmp.eq.s32.totalorder %s19, 0
      %p82 = por %p80, %p81
      %p83 = scmp.ne.s32.totalorder %s71, %s72
      %p84 = scmp.eq.s32.totalorder %s20, 1
      %p85 = por %p83, %p84
      %p87 = scmp.ne.s32.totalorder %s72, %s86
      %p88 = scmp.eq.s32.totalorder %s20, 0
      %p89 = por %p87, %p88
      %s91 = sadd.s32 %s90, 1
      %p94 = scmp.eq.s32.totalorder %s14, 1
      %p95 = scmp.ne.s32.totalorder %s90, %s92
      %p96 = scmp.eq.s32.totalorder %s14, 0
      %p97 = por %p95, %p96
      %p98 = scmp.ne.s32.totalorder %s90, %s92
      %p99 = scmp.eq.s32.totalorder %s19, 1
      %p100 = por %p98, %p99
      %p101 = scmp.ne.s32.totalorder %s92, %s93
      %p102 = scmp.eq.s32.totalorder %s19, 0
      %p103 = por %p101, %p102
      %p104 = scmp.ne.s32.totalorder %s92, %s93
      %p105 = scmp.eq.s32.totalorder %s20, 1
      %p106 = por %p104, %p105
      %p108 = scmp.ne.s32.totalorder %s93, %s107
      %p109 = scmp.eq.s32.totalorder %s20, 0
      %p110 = por %p108, %p109
      %s112 = sadd.s32 %s111, 1
      %p115 = scmp.eq.s32.totalorder %s14, 1
      %p116 = scmp.ne.s32.totalorder %s111, %s113
      %p117 = scmp.eq.s32.totalorder %s14, 0
      %p118 = por %p116, %p117
      %p119 = scmp.ne.s32.totalorder %s111, %s113
      %p120 = scmp.eq.s32.totalorder %s19, 1
      %p121 = por %p119, %p120
      %p122 = scmp.ne.s32.totalorder %s113, %s114
      %p123 = scmp.eq.s32.totalorder %s19, 0
      %p124 = por %p122, %p123
      %p125 = scmp.ne.s32.totalorder %s113, %s114
      %p126 = scmp.eq.s32.totalorder %s20, 1
      %p127 = por %p125, %p126
      %p129 = scmp.ne.s32.totalorder %s114, %s128
      %p130 = scmp.eq.s32.totalorder %s20, 0
      %p131 = por %p129, %p130
      %s132 = ssub.s32 %s14, %s21
      %p133 = scmp.eq.s32.totalorder %s132, 0
      %s135 = sadd.s32 %s134, 1
      %s136 = scalar_select %p133, %s134, %s135
      %p139 = pneg %p133
      %p140 = scmp.eq.s32.totalorder %s14, 1
      %p141 = por %p139, %p140
      %p142 = scmp.ne.s32.totalorder %s134, %s137
      %p143 = scmp.eq.s32.totalorder %s14, 0
      %p144 = por %p142, %p143
      %p145 = scmp.ne.s32.totalorder %s134, %s137
      %p146 = scmp.eq.s32.totalorder %s19, 1
      %p147 = por %p145, %p146
      %p148 = scmp.ne.s32.totalorder %s137, %s138
      %p149 = scmp.eq.s32.totalorder %s19, 0
      %p150 = por %p148, %p149
      %p151 = scmp.ne.s32.totalorder %s137, %s138
      %p152 = scmp.eq.s32.totalorder %s20, 1
      %p153 = por %p151, %p152
      %p155 = scmp.ne.s32.totalorder %s138, %s154
      %p156 = scmp.eq.s32.totalorder %s20, 0
      %p157 = por %p155, %p156
      %p158 = scmp.le.s32.totalorder 1, %s14
      %p159 = scmp.lt.s32.totalorder %s14, 3
      %p160 = pnand %p158, %p159
      %p161 = pneg %p160
      // Predicated region
      $region9: #{resnet_nonlinear_subblock.1} parent=5 // pred_check
        _
      $region10: #{resnet_nonlinear_subblock.1} parent=5 // pred_check_branch
        %163 = sbr.rel (%p160) target = $region12
      $region11: #{resnet_nonlinear_subblock.1} parent=5 // pred_region
        %s164 = ssub.s32 %s14, 1
        // Predicated region
        $region13: #{resnet_nonlinear_subblock.1} parent=11 // pred_check
          %p165 = pneg %p61
        $region14: #{resnet_nonlinear_subblock.1} parent=11 // pred_check_branch
          %167 = sbr.rel (%p165) target = $region16
        $region15: #{resnet_nonlinear_subblock.1} parent=11 // pred_region
          _
        $region16: #{resnet_nonlinear_subblock.1} parent=11 // pred_fallthru
          _
        // Predicated region
        $region17: #{resnet_nonlinear_subblock.1} parent=11 // pred_check
          %p168 = pneg %p82
        $region18: #{resnet_nonlinear_subblock.1} parent=11 // pred_check_branch
          %170 = sbr.rel (%p168) target = $region20
        $region19: #{resnet_nonlinear_subblock.1} parent=11 // pred_region
          _
        $region20: #{resnet_nonlinear_subblock.1} parent=11 // pred_fallthru
          _
        // Predicated region
        $region21: #{resnet_nonlinear_subblock.1} parent=11 // pred_check
          %p171 = pneg %p103
        $region22: #{resnet_nonlinear_subblock.1} parent=11 // pred_check_branch
          %173 = sbr.rel (%p171) target = $region24
        $region23: #{resnet_nonlinear_subblock.1} parent=11 // pred_region
          _
        $region24: #{resnet_nonlinear_subblock.1} parent=11 // pred_fallthru
          _
        // Predicated region
        $region25: #{resnet_nonlinear_subblock.1} parent=11 // pred_check
          %p174 = pneg %p124
        $region26: #{resnet_nonlinear_subblock.1} parent=11 // pred_check_branch
          %176 = sbr.rel (%p174) target = $region28
        $region27: #{resnet_nonlinear_subblock.1} parent=11 // pred_region
          _
        $region28: #{resnet_nonlinear_subblock.1} parent=11 // pred_fallthru
          _
      $region12: #{resnet_nonlinear_subblock.1} parent=5 // pred_fallthru
        _
      %p177 = scmp.lt.s32.totalorder %s14, 2
      // Predicated region
      $region29: #{resnet_nonlinear_subblock.1} parent=5 // pred_check
        %p178 = pneg %p177
      $region30: #{resnet_nonlinear_subblock.1} parent=5 // pred_check_branch
        %180 = sbr.rel (%p178) target = $region32
      $region31: #{resnet_nonlinear_subblock.1} parent=5 // pred_region
        // Predicated region
        $region33: #{resnet_nonlinear_subblock.1} parent=31 // pred_check
          %p181 = pneg %p34
        $region34: #{resnet_nonlinear_subblock.1} parent=31 // pred_check_branch
          %183 = sbr.rel (%p181) target = $region36
        $region35: #{resnet_nonlinear_subblock.1} parent=31 // pred_region
          %s184 = smul.u32 16, %s14
          %p185 = scmp.lt.s32.totalorder %s184, 31
          %s186 = scalar_select %p185, %s184, 31
          %s187 = smul.addr %s186, 8
          %s188 = scalar_lea.vmem %s0, %s187
          %s189 = smul.u32 16, %s14
        $region36: #{resnet_nonlinear_subblock.1} parent=31 // pred_fallthru
          _
      $region32: #{resnet_nonlinear_subblock.1} parent=5 // pred_fallthru
        _
      %p190 = scmp.le.s32.totalorder 1, %s14
      %p191 = scmp.lt.s32.totalorder %s14, 3
      %p192 = pnand %p190, %p191
      %p193 = pneg %p192
      // Predicated region
      $region37: #{resnet_nonlinear_subblock.1} parent=5 // pred_check
        _
      $region38: #{resnet_nonlinear_subblock.1} parent=5 // pred_check_branch
        %195 = sbr.rel (%p192) target = $region40
      $region39: #{resnet_nonlinear_subblock.1} parent=5 // pred_region
        %s196 = ssub.s32 %s14, 1
        %s197 = smul.u32 16, %s19
        %p198 = scmp.lt.s32.totalorder %s197, 31
        %s199 = scalar_select %p198, %s197, 31
        %s200 = smul.addr %s199, 8
        %s201 = scalar_lea.vmem %s0, %s200
        %p202 = pneg %p40
        %p203 = pneg %p37
        %p204 = pneg %p61
        %p205 = pneg %p58
        %p206 = pneg %p82
        %p207 = pneg %p79
        %p208 = pneg %p103
        %p209 = pneg %p100
        %p210 = pneg %p124
        %p211 = pneg %p121
        %p212 = pneg %p150
        %p213 = pneg %p147
        %s214 = sand.u32 %s137, 1
        %s215 = scalar_lea.sflag [#allocation3], %s214
        %s216 = sand.u32 %s137, 1
        %s217 = smul.addr %s216, 128
        %s218 = scalar_lea.vmem [#allocation2], %s217
        %s219 = smul.u32 16, %s19
        %p220 = scmp.lt.s32.totalorder %s219, 31
        %s221 = scalar_select %p220, %s219, 31
        %s222 = smul.addr %s221, 8
        %s223 = scalar_lea.vmem %s0, %s222
        %s224 = smul.u32 16, %s19
        %s225 = smul.u32 16, %s19
        %v227 = vld [vmem:[%s223] sm:$0xff]
        %v228 = vld [vmem:[%s223 + $0x8] sm:$0xff]
        %v229 = vld [vmem:[%s223 + $0x10] sm:$0xff]
        %v230 = vld [vmem:[%s223 + $0x18] sm:$0xff]
        %v231 = vld [vmem:[%s223 + $0x20] sm:$0xff]
        %v232 = vld [vmem:[%s223 + $0x28] sm:$0xff]
        %v233 = vld [vmem:[%s223 + $0x30] sm:$0xff]
        %v234 = vld [vmem:[%s223 + $0x38] sm:$0xff]
        %v235 = vld [vmem:[%s223 + $0x40] sm:$0xff]
        %v236 = vld [vmem:[%s223 + $0x48] sm:$0xff]
        %v237 = vld [vmem:[%s223 + $0x50] sm:$0xff]
        %v238 = vld [vmem:[%s223 + $0x58] sm:$0xff]
        %v239 = vld [vmem:[%s223 + $0x60] sm:$0xff]
        %v240 = vld [vmem:[%s223 + $0x68] sm:$0xff]
        %v241 = vld [vmem:[%s223 + $0x70] sm:$0xff]
        %v242 = vld [vmem:[%s223 + $0x78] sm:$0xff]
        %v243 = vpack.c.bf16 %v228, %v227
        %v244 = vpack.c.bf16 %v230, %v229
        %v245 = vpack.c.bf16 %v232, %v231
        %v246 = vpack.c.bf16 %v234, %v233
        %v247 = vpack.c.bf16 %v236, %v235
        %v248 = vpack.c.bf16 %v238, %v237
        %v249 = vpack.c.bf16 %v240, %v239
        %v250 = vpack.c.bf16 %v242, %v241
        %v251 = vld [vmem:[%s1] sm:$0xf]
        %v252 = vld [vmem:[%s1 + $0x4] sm:$0xf]
        %v253 = vld [vmem:[%s1 + $0x8] sm:$0xf]
        %v254 = vld [vmem:[%s1 + $0xc] sm:$0xf]
        %v255 = vld [vmem:[%s1 + $0x10] sm:$0xf]
        %v256 = vld [vmem:[%s1 + $0x14] sm:$0xf]
        %v257 = vld [vmem:[%s1 + $0x18] sm:$0xf]
        %v258 = vld [vmem:[%s1 + $0x1c] sm:$0xf]
        %v259 = vld [vmem:[%s1 + $0x20] sm:$0xf]
        %v260 = vld [vmem:[%s1 + $0x24] sm:$0xf]
        %v261 = vld [vmem:[%s1 + $0x28] sm:$0xf]
        %v262 = vld [vmem:[%s1 + $0x2c] sm:$0xf]
        %v263 = vld [vmem:[%s1 + $0x30] sm:$0xf]
        %v264 = vld [vmem:[%s1 + $0x34] sm:$0xf]
        %v265 = vld [vmem:[%s1 + $0x38] sm:$0xf]
        %v266 = vld [vmem:[%s1 + $0x3c] sm:$0xf]
        %v267 = vld [vmem:[%s2] sm:$0x1]
        %v269 = vlaneseq
        %v270 = vshrl.u32 %v269, 7
        %v271 = vsub.s32 0, %v270
        %v272 = vrot.slane %v267, %v271
        %v290 = vunpack.c.l.b16 %v251
        %v291 = vunpack.c.l.b16 %v252
        %v292 = vunpack.c.l.b16 %v253
        %v293 = vunpack.c.l.b16 %v254
        %v294 = vunpack.c.l.b16 %v255
        %v295 = vunpack.c.l.b16 %v256
        %v296 = vunpack.c.l.b16 %v257
        %v297 = vunpack.c.l.b16 %v258
        %v298 = vunpack.c.l.b16 %v259
        %v299 = vunpack.c.l.b16 %v260
        %v300 = vunpack.c.l.b16 %v261
        %v301 = vunpack.c.l.b16 %v262
        %v302 = vunpack.c.l.b16 %v263
        %v303 = vunpack.c.l.b16 %v264
        %v304 = vunpack.c.l.b16 %v265
        %v305 = vunpack.c.l.b16 %v266
        %v306 = vpack.c.b16 %v291, %v290
        %v307 = vpack.c.b16 %v293, %v292
        %v308 = vpack.c.b16 %v295, %v294
        %v309 = vpack.c.b16 %v297, %v296
        %v310 = vpack.c.b16 %v299, %v298
        %v311 = vpack.c.b16 %v301, %v300
        %v312 = vpack.c.b16 %v303, %v302
        %v313 = vpack.c.b16 %v305, %v304
        %322 = vmatprep.subr.bf16.mxu0 0
        %323 = vmatpush1.bf16.msra.mxu0 %v313
        %324 = vmatprep.subr.bf16.mxu0 0
        %325 = vmatpush1.bf16.msra.mxu0 %v312
        %326 = vmatprep.subr.bf16.mxu0 0
        %327 = vmatpush1.bf16.msra.mxu0 %v311
        %328 = vmatprep.subr.bf16.mxu0 0
        %329 = vmatpush1.bf16.msra.mxu0 %v310
        %330 = vmatprep.subr.bf16.mxu0 0
        %331 = vmatpush1.bf16.msra.mxu0 %v309
        %332 = vmatprep.subr.bf16.mxu0 0
        %333 = vmatpush1.bf16.msra.mxu0 %v308
        %334 = vmatprep.subr.bf16.mxu0 0
        %335 = vmatpush1.bf16.msra.mxu0 %v307
        %336 = vmatprep.subr.bf16.mxu0 0
        %337 = vmatpush1.bf16.msra.mxu0 %v306
        %338 = vmatprep.subr.bf16.mxu0 0
        %339 = vmatpush2.bf16.msra.mxu0 0
        %340 = vmatprep.subr.bf16.mxu0 0
        %341 = vmatpush2.bf16.msra.mxu0 0
        %342 = vmatprep.subr.bf16.mxu0 0
        %343 = vmatpush2.bf16.msra.mxu0 0
        %344 = vmatprep.subr.bf16.mxu0 0
        %345 = vmatpush2.bf16.msra.mxu0 0
        %346 = vmatprep.subr.bf16.mxu0 0
        %347 = vmatpush2.bf16.msra.mxu0 0
        %348 = vmatprep.subr.bf16.mxu0 0
        %349 = vmatpush2.bf16.msra.mxu0 0
        %350 = vmatprep.subr.bf16.mxu0 0
        %351 = vmatpush2.bf16.msra.mxu0 0
        %352 = vmatprep.subr.bf16.mxu0 0
        %353 = vmatpush2.bf16.msra.mxu0 0
        %354 = vmatprep.mubr.bf16.mxu0 0
        %355 = vmatmul.mubr.bf16.gmra.mxu0 %v243
        %v356 = vpop.f32.mrf.mxu0
        %v357 = vadd.f32 %v272, %v356
        %v358 = vpop.f32.mrf.mxu0
        %v359 = vpop.f32.mrf.mxu0
        %v360 = vadd.f32 %v272, %v359
        %v361 = vpop.f32.mrf.mxu0
        %362 = vmatprep.mubr.bf16.mxu0 0
        %363 = vmatmul.mubr.bf16.gmra.mxu0 %v244
        %v364 = vpop.f32.mrf.mxu0
        %v365 = vadd.f32 %v272, %v364
        %v366 = vpop.f32.mrf.mxu0
        %v367 = vpop.f32.mrf.mxu0
        %v368 = vadd.f32 %v272, %v367
        %v369 = vpop.f32.mrf.mxu0
        %370 = vmatprep.mubr.bf16.mxu0 0
        %371 = vmatmul.mubr.bf16.gmra.mxu0 %v245
        %v372 = vpop.f32.mrf.mxu0
        %v373 = vadd.f32 %v272, %v372
        %v374 = vpop.f32.mrf.mxu0
        %v375 = vpop.f32.mrf.mxu0
        %v376 = vadd.f32 %v272, %v375
        %v377 = vpop.f32.mrf.mxu0
        %378 = vmatprep.mubr.bf16.mxu0 0
        %379 = vmatmul.mubr.bf16.gmra.mxu0 %v246
        %v380 = vpop.f32.mrf.mxu0
        %v381 = vadd.f32 %v272, %v380
        %v382 = vpop.f32.mrf.mxu0
        %v383 = vpop.f32.mrf.mxu0
        %v384 = vadd.f32 %v272, %v383
        %v385 = vpop.f32.mrf.mxu0
        %386 = vmatprep.mubr.bf16.mxu0 0
        %387 = vmatmul.mubr.bf16.gmra.mxu0 %v247
        %v388 = vpop.f32.mrf.mxu0
        %v389 = vadd.f32 %v272, %v388
        %v390 = vpop.f32.mrf.mxu0
        %v391 = vpop.f32.mrf.mxu0
        %v392 = vadd.f32 %v272, %v391
        %v393 = vpop.f32.mrf.mxu0
        %394 = vmatprep.mubr.bf16.mxu0 0
        %395 = vmatmul.mubr.bf16.gmra.mxu0 %v248
        %v396 = vpop.f32.mrf.mxu0
        %v397 = vadd.f32 %v272, %v396
        %v398 = vpop.f32.mrf.mxu0
        %v399 = vpop.f32.mrf.mxu0
        %v400 = vadd.f32 %v272, %v399
        %v401 = vpop.f32.mrf.mxu0
        %402 = vmatprep.mubr.bf16.mxu0 0
        %403 = vmatmul.mubr.bf16.gmra.mxu0 %v249
        %v404 = vpop.f32.mrf.mxu0
        %v405 = vadd.f32 %v272, %v404
        %v406 = vpop.f32.mrf.mxu0
        %v407 = vpop.f32.mrf.mxu0
        %v408 = vadd.f32 %v272, %v407
        %v409 = vpop.f32.mrf.mxu0
        %410 = vmatprep.mubr.bf16.mxu0 0
        %411 = vmatmul.mubr.bf16.gmra.mxu0 %v250
        %v412 = vpop.f32.mrf.mxu0
        %v413 = vadd.f32 %v272, %v412
        %v414 = vpop.f32.mrf.mxu0
        %v415 = vpop.f32.mrf.mxu0
        %v416 = vadd.f32 %v272, %v415
        %v417 = vpop.f32.mrf.mxu0
        %418 = vdwg.mxu0
        %v419 = vmax.f32 %v357, 0.0
        %v420 = vmax.f32 %v360, 0.0
        %v421 = vmax.f32 %v365, 0.0
        %v422 = vmax.f32 %v368, 0.0
        %v423 = vmax.f32 %v373, 0.0
        %v424 = vmax.f32 %v376, 0.0
        %v425 = vmax.f32 %v381, 0.0
        %v426 = vmax.f32 %v384, 0.0
        %v427 = vmax.f32 %v389, 0.0
        %v428 = vmax.f32 %v392, 0.0
        %v429 = vmax.f32 %v397, 0.0
        %v430 = vmax.f32 %v400, 0.0
        %v431 = vmax.f32 %v405, 0.0
        %v432 = vmax.f32 %v408, 0.0
        %v433 = vmax.f32 %v413, 0.0
        %v434 = vmax.f32 %v416, 0.0
        %v435 = vpack.c.bf16 %v420, %v419
        %v436 = vpack.c.bf16 %v422, %v421
        %v437 = vpack.c.bf16 %v424, %v423
        %v438 = vpack.c.bf16 %v426, %v425
        %v439 = vpack.c.bf16 %v428, %v427
        %v440 = vpack.c.bf16 %v430, %v429
        %v441 = vpack.c.bf16 %v432, %v431
        %v442 = vpack.c.bf16 %v434, %v433
        %v443 = vld [vmem:[%s3] sm:$0xf]
        %v444 = vld [vmem:[%s3 + $0x4] sm:$0xf]
        %v445 = vld [vmem:[%s3 + $0x8] sm:$0xf]
        %v446 = vld [vmem:[%s3 + $0xc] sm:$0xf]
        %v447 = vld [vmem:[%s3 + $0x10] sm:$0xf]
        %v448 = vld [vmem:[%s3 + $0x14] sm:$0xf]
        %v449 = vld [vmem:[%s3 + $0x18] sm:$0xf]
        %v450 = vld [vmem:[%s3 + $0x1c] sm:$0xf]
        %v451 = vld [vmem:[%s3 + $0x20] sm:$0xf]
        %v452 = vld [vmem:[%s3 + $0x24] sm:$0xf]
        %v453 = vld [vmem:[%s3 + $0x28] sm:$0xf]
        %v454 = vld [vmem:[%s3 + $0x2c] sm:$0xf]
        %v455 = vld [vmem:[%s3 + $0x30] sm:$0xf]
        %v456 = vld [vmem:[%s3 + $0x34] sm:$0xf]
        %v457 = vld [vmem:[%s3 + $0x38] sm:$0xf]
        %v458 = vld [vmem:[%s3 + $0x3c] sm:$0xf]
        %v459 = vld [vmem:[%s4] sm:$0x1]
        %v461 = vlaneseq
        %v462 = vshrl.u32 %v461, 7
        %v463 = vsub.s32 0, %v462
        %v464 = vrot.slane %v459, %v463
        %v482 = vunpack.c.l.b16 %v443
        %v483 = vunpack.c.l.b16 %v444
        %v484 = vunpack.c.l.b16 %v445
        %v485 = vunpack.c.l.b16 %v446
        %v486 = vunpack.c.l.b16 %v447
        %v487 = vunpack.c.l.b16 %v448
        %v488 = vunpack.c.l.b16 %v449
        %v489 = vunpack.c.l.b16 %v450
        %v490 = vunpack.c.l.b16 %v451
        %v491 = vunpack.c.l.b16 %v452
        %v492 = vunpack.c.l.b16 %v453
        %v493 = vunpack.c.l.b16 %v454
        %v494 = vunpack.c.l.b16 %v455
        %v495 = vunpack.c.l.b16 %v456
        %v496 = vunpack.c.l.b16 %v457
        %v497 = vunpack.c.l.b16 %v458
        %v498 = vpack.c.b16 %v483, %v482
        %v499 = vpack.c.b16 %v485, %v484
        %v500 = vpack.c.b16 %v487, %v486
        %v501 = vpack.c.b16 %v489, %v488
        %v502 = vpack.c.b16 %v491, %v490
        %v503 = vpack.c.b16 %v493, %v492
        %v504 = vpack.c.b16 %v495, %v494
        %v505 = vpack.c.b16 %v497, %v496
        %514 = vmatprep.subr.bf16.mxu0 0
        %515 = vmatpush1.bf16.msra.mxu0 %v505
        %516 = vmatprep.subr.bf16.mxu0 0
        %517 = vmatpush1.bf16.msra.mxu0 %v504
        %518 = vmatprep.subr.bf16.mxu0 0
        %519 = vmatpush1.bf16.msra.mxu0 %v503
        %520 = vmatprep.subr.bf16.mxu0 0
        %521 = vmatpush1.bf16.msra.mxu0 %v502
        %522 = vmatprep.subr.bf16.mxu0 0
        %523 = vmatpush1.bf16.msra.mxu0 %v501
        %524 = vmatprep.subr.bf16.mxu0 0
        %525 = vmatpush1.bf16.msra.mxu0 %v500
        %526 = vmatprep.subr.bf16.mxu0 0
        %527 = vmatpush1.bf16.msra.mxu0 %v499
        %528 = vmatprep.subr.bf16.mxu0 0
        %529 = vmatpush1.bf16.msra.mxu0 %v498
        %530 = vmatprep.subr.bf16.mxu0 0
        %531 = vmatpush2.bf16.msra.mxu0 0
        %532 = vmatprep.subr.bf16.mxu0 0
        %533 = vmatpush2.bf16.msra.mxu0 0
        %534 = vmatprep.subr.bf16.mxu0 0
        %535 = vmatpush2.bf16.msra.mxu0 0
        %536 = vmatprep.subr.bf16.mxu0 0
        %537 = vmatpush2.bf16.msra.mxu0 0
        %538 = vmatprep.subr.bf16.mxu0 0
        %539 = vmatpush2.bf16.msra.mxu0 0
        %540 = vmatprep.subr.bf16.mxu0 0
        %541 = vmatpush2.bf16.msra.mxu0 0
        %542 = vmatprep.subr.bf16.mxu0 0
        %543 = vmatpush2.bf16.msra.mxu0 0
        %544 = vmatprep.subr.bf16.mxu0 0
        %545 = vmatpush2.bf16.msra.mxu0 0
        %546 = vmatprep.mubr.bf16.mxu0 0
        %547 = vmatmul.mubr.bf16.gmra.mxu0 %v435
        %v548 = vpop.f32.mrf.mxu0
        %v549 = vadd.f32 %v464, %v548
        %v550 = vpop.f32.mrf.mxu0
        %v551 = vpop.f32.mrf.mxu0
        %v552 = vadd.f32 %v464, %v551
        %v553 = vpop.f32.mrf.mxu0
        %554 = vmatprep.mubr.bf16.mxu0 0
        %555 = vmatmul.mubr.bf16.gmra.mxu0 %v436
        %v556 = vpop.f32.mrf.mxu0
        %v557 = vadd.f32 %v464, %v556
        %v558 = vpop.f32.mrf.mxu0
        %v559 = vpop.f32.mrf.mxu0
        %v560 = vadd.f32 %v464, %v559
        %v561 = vpop.f32.mrf.mxu0
        %562 = vmatprep.mubr.bf16.mxu0 0
        %563 = vmatmul.mubr.bf16.gmra.mxu0 %v437
        %v564 = vpop.f32.mrf.mxu0
        %v565 = vadd.f32 %v464, %v564
        %v566 = vpop.f32.mrf.mxu0
        %v567 = vpop.f32.mrf.mxu0
        %v568 = vadd.f32 %v464, %v567
        %v569 = vpop.f32.mrf.mxu0
        %570 = vmatprep.mubr.bf16.mxu0 0
        %571 = vmatmul.mubr.bf16.gmra.mxu0 %v438
        %v572 = vpop.f32.mrf.mxu0
        %v573 = vadd.f32 %v464, %v572
        %v574 = vpop.f32.mrf.mxu0
        %v575 = vpop.f32.mrf.mxu0
        %v576 = vadd.f32 %v464, %v575
        %v577 = vpop.f32.mrf.mxu0
        %578 = vmatprep.mubr.bf16.mxu0 0
        %579 = vmatmul.mubr.bf16.gmra.mxu0 %v439
        %v580 = vpop.f32.mrf.mxu0
        %v581 = vadd.f32 %v464, %v580
        %v582 = vpop.f32.mrf.mxu0
        %v583 = vpop.f32.mrf.mxu0
        %v584 = vadd.f32 %v464, %v583
        %v585 = vpop.f32.mrf.mxu0
        %586 = vmatprep.mubr.bf16.mxu0 0
        %587 = vmatmul.mubr.bf16.gmra.mxu0 %v440
        %v588 = vpop.f32.mrf.mxu0
        %v589 = vadd.f32 %v464, %v588
        %v590 = vpop.f32.mrf.mxu0
        %v591 = vpop.f32.mrf.mxu0
        %v592 = vadd.f32 %v464, %v591
        %v593 = vpop.f32.mrf.mxu0
        %594 = vmatprep.mubr.bf16.mxu0 0
        %595 = vmatmul.mubr.bf16.gmra.mxu0 %v441
        %v596 = vpop.f32.mrf.mxu0
        %v597 = vadd.f32 %v464, %v596
        %v598 = vpop.f32.mrf.mxu0
        %v599 = vpop.f32.mrf.mxu0
        %v600 = vadd.f32 %v464, %v599
        %v601 = vpop.f32.mrf.mxu0
        %602 = vmatprep.mubr.bf16.mxu0 0
        %603 = vmatmul.mubr.bf16.gmra.mxu0 %v442
        %v604 = vpop.f32.mrf.mxu0
        %v605 = vadd.f32 %v464, %v604
        %v606 = vpop.f32.mrf.mxu0
        %v607 = vpop.f32.mrf.mxu0
        %v608 = vadd.f32 %v464, %v607
        %v609 = vpop.f32.mrf.mxu0
        %610 = vdwg.mxu0
        %611 = vst [vmem:[%s218] sm:$0xff] %v549
        %612 = vst [vmem:[%s218 + $0x8] sm:$0xff] %v552
        %613 = vst [vmem:[%s218 + $0x10] sm:$0xff] %v557
        %614 = vst [vmem:[%s218 + $0x18] sm:$0xff] %v560
        %615 = vst [vmem:[%s218 + $0x20] sm:$0xff] %v565
        %616 = vst [vmem:[%s218 + $0x28] sm:$0xff] %v568
        %617 = vst [vmem:[%s218 + $0x30] sm:$0xff] %v573
        %618 = vst [vmem:[%s218 + $0x38] sm:$0xff] %v576
        %619 = vst [vmem:[%s218 + $0x40] sm:$0xff] %v581
        %620 = vst [vmem:[%s218 + $0x48] sm:$0xff] %v584
        %621 = vst [vmem:[%s218 + $0x50] sm:$0xff] %v589
        %622 = vst [vmem:[%s218 + $0x58] sm:$0xff] %v592
        %623 = vst [vmem:[%s218 + $0x60] sm:$0xff] %v597
        %624 = vst [vmem:[%s218 + $0x68] sm:$0xff] %v600
        %625 = vst [vmem:[%s218 + $0x70] sm:$0xff] %v605
        %626 = vst [vmem:[%s218 + $0x78] sm:$0xff] %v608
        %s627 = sand.u32 %s137, 1
        %s628 = scalar_lea.sflag [#allocation3], %s627
        %s629 = sand.u32 %s137, 1
        %s630 = smul.addr %s629, 128
        %s631 = scalar_lea.vmem [#allocation2], %s630
        // Predicated region
        $region41: #{resnet_nonlinear_subblock.1} parent=39 // pred_check
          %p632 = pneg %p147
        $region42: #{resnet_nonlinear_subblock.1} parent=39 // pred_check_branch
          %634 = sbr.rel (%p632) target = $region44
        $region43: #{resnet_nonlinear_subblock.1} parent=39 // pred_region
          %s635 = smul.u32 16, %s19
          %s637 = ssub.s32 2048, 2048
          %638 = vsyncadd %s628, %s637
          %s639 = smul.addr %s635, 128
          %s640 = scalar_lea.hbm %s5, %s639
          %s641 = sshll.u32 %s631, 4
          %s642 = int_to_ptr.vmem [resolvable:$true] %s641
          %647 = dma.vmem_to_hbm [thread:$0]  %s642, 2048, %s640, %s628, 128, 128, 8
        $region44: #{resnet_nonlinear_subblock.1} parent=39 // pred_fallthru
          _
      $region40: #{resnet_nonlinear_subblock.1} parent=5 // pred_fallthru
        _
      %p648 = scmp.le.s32.totalorder 2, %s14
      // Predicated region
      $region45: #{resnet_nonlinear_subblock.1} parent=5 // pred_check
        %p649 = pneg %p648
      $region46: #{resnet_nonlinear_subblock.1} parent=5 // pred_check_branch
        %651 = sbr.rel (%p649) target = $region48
      $region47: #{resnet_nonlinear_subblock.1} parent=5 // pred_region
        %s652 = ssub.s32 %s14, 2
        // Predicated region
        $region49: #{resnet_nonlinear_subblock.1} parent=47 // pred_check
          %p653 = pneg %p153
        $region50: #{resnet_nonlinear_subblock.1} parent=47 // pred_check_branch
          %655 = sbr.rel (%p653) target = $region52
        $region51: #{resnet_nonlinear_subblock.1} parent=47 // pred_region
          %s656 = sand.u32 %s138, 1
          %s657 = scalar_lea.sflag [#allocation3], %s656
          %s658 = sand.u32 %s138, 1
          %s659 = smul.addr %s658, 128
          %s660 = scalar_lea.vmem [#allocation2], %s659
          %661 = dma.done %s657, 2048
        $region52: #{resnet_nonlinear_subblock.1} parent=47 // pred_fallthru
          _
      $region48: #{resnet_nonlinear_subblock.1} parent=5 // pred_fallthru
        _
    $region6: #{resnet_nonlinear_subblock.1} parent=1 // loop_footer
      %s18 = sadd.s32 1, %s14
    $region7: #{resnet_nonlinear_subblock.1} parent=1 // loop_footer_branch
      %13 = sbr.rel target = $region3
    $region8: #{resnet_nonlinear_subblock.1} parent=1 // loop_exit
      _
    %662 = vsyncpa [#allocation3], 1
    %s663 = scalar_lea.sflag [#allocation3], 1
    %664 = vsyncpa %s663, 1

</llo_original>
